<compile_context>
chip_gen: v6e
topology: v6e:2x2x1
jax: 0.10.0
libtpu: 0.0.40
codegen_flags: <defaults>
</compile_context>

<pallas_src>
import math

import jax
import jax.numpy as jnp
from jax.experimental import pallas as pl
from jax.experimental.pallas import tpu as pltpu


def _gauss_taps_1d(size, sigma):
    """Normalized 1-D Gaussian taps as Python floats (compile-time constants)."""
    mean = (size - 1) / 2.0
    g = [math.exp(-(((i - mean) / sigma) ** 2) / 2.0) for i in range(size)]
    s = sum(g)
    return tuple(float(v / s) for v in g)


def _make_separable_blur_kernel(wv, wh, lane_roll):
    """Kernel factory. wv/wh are Python-float tap tuples (closed over, no DMA)."""
    kH, kW = len(wv), len(wh)

    def kernel(x_ref, o_ref):
        # x_ref: (TC, H, W)      block of TC flattened (batch*channel) slices
        # o_ref: (TC, Ho, W_out) valid-conv rows; if lane_roll, the last kW-1
        #        columns are wrap-around junk that the wrapper crops off.
        x = x_ref[...].astype(jnp.float32)
        H, W = x.shape[1], x.shape[2]
        Ho = H - kH + 1
        Wo = W - kW + 1

        # Vertical pass: kH sublane-shifted MACs with immediate scalar taps.
        tmp = wv[0] * x[:, 0:Ho, :]
        for di in range(1, kH):
            tmp = tmp + wv[di] * x[:, di:di + Ho, :]

        # Horizontal pass: kW taps.
        if lane_roll:
            # Lane rotations go to the XLU slot; accumulation stays full-W
            # (lane-dense, unmasked stores). Wrapped columns are cropped later.
            acc = wh[0] * tmp
            for dj in range(1, kW):
                acc = acc + wh[dj] * pltpu.roll(tmp, W - dj, axis=2)
        else:
            # Safe path for small / unaligned W: static lane-axis windows.
            acc = wh[0] * tmp[:, :, 0:Wo]
            for dj in range(1, kW):
                acc = acc + wh[dj] * tmp[:, :, dj:dj + Wo]

        o_ref[...] = acc.astype(o_ref.dtype)

    return kernel


def _pick_block_channels(N, H, W, Ho, W_out, itemsize, vmem_budget=20 << 20):
    """Largest divisor of N whose (TC, ...) tile set fits the VMEM budget.

    Accounts for double-buffered input and output blocks plus ~3 f32-sized
    in-kernel temporaries (x, tmp, acc).  Capped so the grid keeps >= 2 steps
    when possible (v7x dual TensorCore sharding / pipelining overlap)."""
    per_slice = (2 * H * W + 2 * Ho * W_out) * itemsize + 3 * H * W * 4
    max_tc = max(1, vmem_budget // max(1, per_slice))
    if N >= 2:
        max_tc = min(max_tc, N // 2)
    max_tc = max(1, min(max_tc, N))
    for d in range(max_tc, 0, -1):
        if N % d == 0:
            return d
    return 1


def gaussian_smoothing(x, kernel_size, sigma):
    """Depthwise 'valid' 2-D Gaussian blur.

    x: (B, C, H, W). Matches GaussianSmoothing(C, kernel_size, sigma, dim=2)(x),
    i.e. F.conv2d(x, weight, groups=C) with the Gaussian weight from __init__.
    """
    if isinstance(kernel_size, (int, float)):
        kernel_size = [int(kernel_size)] * 2
    if isinstance(sigma, (int, float)):
        sigma = [float(sigma)] * 2
    kH, kW = int(kernel_size[0]), int(kernel_size[1])
    wv = _gauss_taps_1d(kH, float(sigma[0]))
    wh = _gauss_taps_1d(kW, float(sigma[1]))

    B, C, H, W = x.shape
    Ho, Wo = H - kH + 1, W - kW + 1
    N = B * C
    xf = x.reshape(N, H, W)

    # Lane-dense output only pays off (and the lane rotation is well-formed)
    # when W is a multiple of the 128-lane vreg width; otherwise use Wo output.
    lane_roll = (W % 128 == 0) and (kW > 1)
    W_out = W if lane_roll else Wo

    TC = _pick_block_channels(N, H, W, Ho, W_out, jnp.dtype(x.dtype).itemsize)
    grid = (N // TC,)

    out = pl.pallas_call(
        _make_separable_blur_kernel(wv, wh, lane_roll),
        out_shape=jax.ShapeDtypeStruct((N, Ho, W_out), x.dtype),
        grid=grid,
        in_specs=[pl.BlockSpec((TC, H, W), lambda n: (n, 0, 0))],
        out_specs=pl.BlockSpec((TC, Ho, W_out), lambda n: (n, 0, 0)),
        compiler_params=pltpu.CompilerParams(
            dimension_semantics=("parallel",),
            vmem_limit_bytes=32 * 1024 * 1024,
        ),
    )(xf)

    return out[:, :, :Wo].reshape(B, C, Ho, Wo)


def make_gaussian_weight(channels, kernel_size, sigma, dim=2):
    """Replicates GaussianSmoothing.__init__ weight construction (dim=2).

    Returns weight of shape (channels, kH, kW) (PyTorch's (C,1,kH,kW) with the
    singleton squeezed; re-add it for the conv reference)."""
    if isinstance(kernel_size, (int, float)):
        kernel_size = [int(kernel_size)] * dim
    if isinstance(sigma, (int, float)):
        sigma = [float(sigma)] * dim

    grids = jnp.meshgrid(
        *[jnp.arange(s, dtype=jnp.float32) for s in kernel_size], indexing="ij"
    )
    kernel = jnp.ones((), jnp.float32)
    for size, std, mgrid in zip(kernel_size, sigma, grids):
        mean = (size - 1) / 2
        kernel = kernel * (
            1.0 / (std * math.sqrt(2 * math.pi))
            * jnp.exp(-(((mgrid - mean) / std) ** 2) / 2)
        )
    kernel = kernel / jnp.sum(kernel)
    kernel = jnp.broadcast_to(kernel[None, :, :], (channels,) + kernel.shape)
    return kernel.astype(jnp.float32)


if __name__ == "__main__":
    B, C, H, W = 2, 4, 16, 16
    kernel_size, sigma = 3, 1.0

    key = jax.random.PRNGKey(0)
    x = jax.random.normal(key, (B, C, H, W), dtype=jnp.float32)

    out = gaussian_smoothing(x, kernel_size, sigma)
    out = jax.block_until_ready(out)

    # Pure-JAX reference: depthwise conv2d, groups=C, no padding (matches F.conv2d).
    weight = make_gaussian_weight(C, kernel_size, sigma, dim=2)
    ref = jax.lax.conv_general_dilated(
        x,
        weight[:, None, :, :],               # (C, 1, kH, kW) = OIHW with groups=C
        window_strides=(1, 1),
        padding="VALID",
        feature_group_count=C,
        dimension_numbers=("NCHW", "OIHW", "NCHW"),
    )

    assert out.shape == (B, C, H - kernel_size + 1, W - kernel_size + 1)
    assert jnp.allclose(out, ref, atol=1e-5, rtol=1e-5)
    print("KERNEL_OK")
</pallas_src>

<mosaic_0001>
module attributes {stable_mosaic.version = 11 : i64} {
  func.func @kernel(%arg0: i32, %arg1: memref<4x16x16xf32, #tpu.memory_space<vmem>>, %arg2: memref<4x14x14xf32, #tpu.memory_space<vmem>>) attributes {dimension_semantics = [#tpu.dimension_semantics<parallel>], iteration_bounds = array<i64: 2>, scalar_prefetch = 0 : i64, scratch_operands = 0 : i64, tpu.core_type = #tpu.core_type<tc>, window_params = [{transform_indices = @transform_0, window_bounds = array<i64: 4, 16, 16>}, {transform_indices = @transform_1, window_bounds = array<i64: 4, 14, 14>}]} {
    %c0 = arith.constant 0 : index
    %c0_0 = arith.constant 0 : index
    %c0_1 = arith.constant 0 : index
    %0 = vector.load %arg1[%c0, %c0_0, %c0_1] : memref<4x16x16xf32, #tpu.memory_space<vmem>>, vector<4x16x16xf32>
    %1 = vector.extract_strided_slice %0 {offsets = [0, 0, 0], sizes = [4, 14, 16], strides = [1, 1, 1]} : vector<4x16x16xf32> to vector<4x14x16xf32>
    %cst = arith.constant 0.274068624 : f32
    %2 = vector.broadcast %cst : f32 to vector<4x14x16xf32>
    %3 = arith.mulf %2, %1 : vector<4x14x16xf32>
    %4 = vector.extract_strided_slice %0 {offsets = [0, 1, 0], sizes = [4, 14, 16], strides = [1, 1, 1]} : vector<4x16x16xf32> to vector<4x14x16xf32>
    %cst_2 = arith.constant 0.451862752 : f32
    %5 = vector.broadcast %cst_2 : f32 to vector<4x14x16xf32>
    %6 = arith.mulf %5, %4 : vector<4x14x16xf32>
    %7 = arith.addf %3, %6 : vector<4x14x16xf32>
    %8 = vector.extract_strided_slice %0 {offsets = [0, 2, 0], sizes = [4, 14, 16], strides = [1, 1, 1]} : vector<4x16x16xf32> to vector<4x14x16xf32>
    %cst_3 = arith.constant 0.274068624 : f32
    %9 = vector.broadcast %cst_3 : f32 to vector<4x14x16xf32>
    %10 = arith.mulf %9, %8 : vector<4x14x16xf32>
    %11 = arith.addf %7, %10 : vector<4x14x16xf32>
    %12 = vector.extract_strided_slice %11 {offsets = [0, 0, 0], sizes = [4, 14, 14], strides = [1, 1, 1]} : vector<4x14x16xf32> to vector<4x14x14xf32>
    %cst_4 = arith.constant 0.274068624 : f32
    %13 = vector.broadcast %cst_4 : f32 to vector<4x14x14xf32>
    %14 = arith.mulf %13, %12 : vector<4x14x14xf32>
    %15 = vector.extract_strided_slice %11 {offsets = [0, 0, 1], sizes = [4, 14, 14], strides = [1, 1, 1]} : vector<4x14x16xf32> to vector<4x14x14xf32>
    %cst_5 = arith.constant 0.451862752 : f32
    %16 = vector.broadcast %cst_5 : f32 to vector<4x14x14xf32>
    %17 = arith.mulf %16, %15 : vector<4x14x14xf32>
    %18 = arith.addf %14, %17 : vector<4x14x14xf32>
    %19 = vector.extract_strided_slice %11 {offsets = [0, 0, 2], sizes = [4, 14, 14], strides = [1, 1, 1]} : vector<4x14x16xf32> to vector<4x14x14xf32>
    %cst_6 = arith.constant 0.274068624 : f32
    %20 = vector.broadcast %cst_6 : f32 to vector<4x14x14xf32>
    %21 = arith.mulf %20, %19 : vector<4x14x14xf32>
    %22 = arith.addf %18, %21 : vector<4x14x14xf32>
    %c0_7 = arith.constant 0 : index
    %c0_8 = arith.constant 0 : index
    %c0_9 = arith.constant 0 : index
    %23 = vector.load %arg2[%c0_7, %c0_8, %c0_9] : memref<4x14x14xf32, #tpu.memory_space<vmem>>, vector<4x14x14xf32>
    tpu.vector_store %arg2[%c0_7, %c0_8, %c0_9], %22 {strides = array<i32>} : memref<4x14x14xf32, #tpu.memory_space<vmem>>, vector<4x14x14xf32>,
    return
  }
  func.func @transform_0(%arg0: i32) -> (i32, i32, i32) {
    %c0_i32 = arith.constant 0 : i32
    %c0_i32_0 = arith.constant 0 : i32
    %c0_i32_1 = arith.constant 0 : i32
    return %arg0, %c0_i32, %c0_i32_0 : i32, i32, i32
  }
  func.func @transform_1(%arg0: i32) -> (i32, i32, i32) {
    %c0_i32 = arith.constant 0 : i32
    %c0_i32_0 = arith.constant 0 : i32
    %c0_i32_1 = arith.constant 0 : i32
    return %arg0, %c0_i32, %c0_i32_0 : i32, i32, i32
  }
}

</mosaic_0001>

<llo_original>
// kernel: tpu_custom_call.1
$region0: #{tpu_custom_call.1}
  #allocation0 [shape = 'u32[]', space=smem, size = 0x4, offset = 0x4, fixed_abs, tag = 'smem constant byte address 0x4 - core index']
  #allocation1 [shape = 'u32[144,128]{1,0:T(1,128)}', space=vmem, size = 0x12000, scoped, tag = 'internal scratch']
  %s0 = inlined_call_operand.hbm [shape: f32[8,16,16], index: 0, kind: input, shape index: {}]
  %s1 = inlined_call_operand.vmem [shape: f32[8,14,14], index: 1, kind: output, shape index: {}]
  %s2 = sld [smem:[#allocation0]]
  $region41: #{tpu_custom_call.1} parent=0
    _
  %s4 = ssub.s32 1, %s2
  %s5 = scalar_select 0, %s4, %s2
  $region1: #{tpu_custom_call.1} parent=0
    #allocation2 [shape = 'u8[65536]{0}', space=vmem, size = 0x10000, scoped, tag = 'input window, operand 0']
    #allocation3 [shape = 's32[2]{0}', space=sflag, size = 0x8, scoped, tag = 'scoped memory for tpu_custom_call.1']
    %6 = vsyncpa [#allocation3], 0
    %s7 = scalar_lea.sflag [#allocation3], 1
    %8 = vsyncpa %s7, 0
    loop: start=0, step=1, limit=4
    $region2: #{tpu_custom_call.1} parent=1 // loop_pre_header
      _
    $region3: #{tpu_custom_call.1} parent=1 // loop_header
      %s10 = sphi 0, %s14
      %p11 = scmp.ge.s32.totalorder %s10, 4
      %s20 = sphi 0, %s22
      %s23 = sphi 0, %s20
      %s24 = sphi 0, %s23
      %s40 = sphi 0, %s24
      %s46 = sphi 0, %s48
      %s49 = sphi 0, %s46
      %s50 = sphi 0, %s49
      %s66 = sphi 0, %s50
    $region4: #{tpu_custom_call.1} parent=1 // loop_header_branch
      %13 = sbr.rel (%p11) target = $region8
    $region5: #{tpu_custom_call.1} parent=1 // loop_body
      %s15 = ssub.s32 %s10, 1
      %s16 = ssub.s32 %s10, 2
      %s17 = sadd.s32 %s10, 1
      %s18 = ssub.s32 %s10, %s17
      %p19 = scmp.eq.s32.totalorder %s18, 0
      %s21 = sadd.s32 %s20, 1
      %s22 = scalar_select %p19, %s20, %s21
      %p25 = pneg %p19
      %p26 = scmp.eq.s32.totalorder %s10, 1
      %p27 = por %p25, %p26
      %p28 = scmp.ne.s32.totalorder %s20, %s23
      %p29 = scmp.eq.s32.totalorder %s10, 0
      %p30 = por %p28, %p29
      %p31 = scmp.ne.s32.totalorder %s20, %s23
      %p32 = scmp.eq.s32.totalorder %s15, 1
      %p33 = por %p31, %p32
      %p34 = scmp.ne.s32.totalorder %s23, %s24
      %p35 = scmp.eq.s32.totalorder %s15, 0
      %p36 = por %p34, %p35
      %p37 = scmp.ne.s32.totalorder %s23, %s24
      %p38 = scmp.eq.s32.totalorder %s16, 1
      %p39 = por %p37, %p38
      %p41 = scmp.ne.s32.totalorder %s24, %s40
      %p42 = scmp.eq.s32.totalorder %s16, 0
      %p43 = por %p41, %p42
      %s44 = ssub.s32 %s10, %s17
      %p45 = scmp.eq.s32.totalorder %s44, 0
      %s47 = sadd.s32 %s46, 1
      %s48 = scalar_select %p45, %s46, %s47
      %p51 = pneg %p45
      %p52 = scmp.eq.s32.totalorder %s10, 1
      %p53 = por %p51, %p52
      %p54 = scmp.ne.s32.totalorder %s46, %s49
      %p55 = scmp.eq.s32.totalorder %s10, 0
      %p56 = por %p54, %p55
      %p57 = scmp.ne.s32.totalorder %s46, %s49
      %p58 = scmp.eq.s32.totalorder %s15, 1
      %p59 = por %p57, %p58
      %p60 = scmp.ne.s32.totalorder %s49, %s50
      %p61 = scmp.eq.s32.totalorder %s15, 0
      %p62 = por %p60, %p61
      %p63 = scmp.ne.s32.totalorder %s49, %s50
      %p64 = scmp.eq.s32.totalorder %s16, 1
      %p65 = por %p63, %p64
      %p67 = scmp.ne.s32.totalorder %s50, %s66
      %p68 = scmp.eq.s32.totalorder %s16, 0
      %p69 = por %p67, %p68
      %p70 = scmp.le.s32.totalorder 1, %s10
      %p71 = scmp.lt.s32.totalorder %s10, 3
      %p72 = pnand %p70, %p71
      %p73 = pneg %p72
      // Predicated region
      $region9: #{tpu_custom_call.1} parent=5 // pred_check
        _
      $region10: #{tpu_custom_call.1} parent=5 // pred_check_branch
        %75 = sbr.rel (%p72) target = $region12
      $region11: #{tpu_custom_call.1} parent=5 // pred_region
        %s76 = ssub.s32 %s10, 1
      $region12: #{tpu_custom_call.1} parent=5 // pred_fallthru
        _
      %p77 = scmp.lt.s32.totalorder %s10, 2
      // Predicated region
      $region13: #{tpu_custom_call.1} parent=5 // pred_check
        %p78 = pneg %p77
      $region14: #{tpu_custom_call.1} parent=5 // pred_check_branch
        %80 = sbr.rel (%p78) target = $region16
      $region15: #{tpu_custom_call.1} parent=5 // pred_region
        // Predicated region
        $region17: #{tpu_custom_call.1} parent=15 // pred_check
          %p81 = pneg %p30
        $region18: #{tpu_custom_call.1} parent=15 // pred_check_branch
          %83 = sbr.rel (%p81) target = $region20
        $region19: #{tpu_custom_call.1} parent=15 // pred_region
          %s84 = sand.u32 %s20, 1
          %s85 = scalar_lea.sflag [#allocation3], %s84
          %s86 = sand.u32 %s20, 1
          %s87 = smul.addr %s86, 64
          %s88 = scalar_lea.vmem [#allocation2], %s87
          %s89 = smul.u32 4, %s10
          %s91 = ssub.s32 1024, 1024
          %92 = vsyncadd %s85, %s91
          %s93 = smul.addr %s89, 2
          %s94 = smul.addr %s93, 128
          %s95 = scalar_lea.hbm %s0, %s94
          %s96 = sshll.u32 %s88, 4
          %s97 = int_to_ptr.vmem [resolvable:$true] %s96
          %102 = dma.hbm_to_vmem [thread:$0]  %s95, 1024, %s97, %s85, 128, 128, 8
        $region20: #{tpu_custom_call.1} parent=15 // pred_fallthru
          _
      $region16: #{tpu_custom_call.1} parent=5 // pred_fallthru
        _
      %p103 = scmp.le.s32.totalorder 1, %s10
      %p104 = scmp.lt.s32.totalorder %s10, 3
      %p105 = pnand %p103, %p104
      %p106 = pneg %p105
      // Predicated region
      $region21: #{tpu_custom_call.1} parent=5 // pred_check
        _
      $region22: #{tpu_custom_call.1} parent=5 // pred_check_branch
        %108 = sbr.rel (%p105) target = $region24
      $region23: #{tpu_custom_call.1} parent=5 // pred_region
        %s109 = ssub.s32 %s10, 1
        %s110 = sand.u32 %s23, 1
        %s111 = scalar_lea.sflag [#allocation3], %s110
        %s112 = sand.u32 %s23, 1
        %s113 = smul.addr %s112, 64
        %s114 = scalar_lea.vmem [#allocation2], %s113
        // Predicated region
        $region25: #{tpu_custom_call.1} parent=23 // pred_check
          %p115 = pneg %p36
        $region26: #{tpu_custom_call.1} parent=23 // pred_check_branch
          %117 = sbr.rel (%p115) target = $region28
        $region27: #{tpu_custom_call.1} parent=23 // pred_region
          %118 = dma.done %s111, 1024
        $region28: #{tpu_custom_call.1} parent=23 // pred_fallthru
          _
        %s119 = sand.u32 %s23, 1
        %s120 = scalar_lea.sflag [#allocation3], %s119
        %s121 = sand.u32 %s23, 1
        %s122 = smul.addr %s121, 64
        %s123 = scalar_lea.vmem [#allocation2], %s122
        %p124 = pneg %p36
        %p125 = pneg %p33
        %p126 = pneg %p62
        %p127 = pneg %p59
        %s128 = smul.u32 4, %s15
        %p129 = scmp.lt.s32.totalorder %s128, 7
        %s130 = scalar_select %p129, %s128, 7
        %s131 = smul.addr %s130, 2
        %s132 = smul.addr %s131, 8
        %s133 = scalar_lea.vmem %s1, %s132
        %s134 = smul.u32 4, %s15
        %s135 = smul.u32 4, %s15
        %p136 = scmp.lt.s32.totalorder %s135, 7
        %s137 = scalar_select %p136, %s135, 7
        %s138 = smul.addr %s137, 2
        %s139 = smul.addr %s138, 8
        %s140 = scalar_lea.vmem %s1, %s139
        %s141 = smul.u32 4, %s15
        %v142 = vld [vmem:[%s114] sm:$0xff]
        %v143 = vld [vmem:[%s114 + $0x8] sm:$0xff]
        %v144 = vld [vmem:[%s114 + $0x10] sm:$0xff]
        %v145 = vld [vmem:[%s114 + $0x18] sm:$0xff]
        %v146 = vld [vmem:[%s114 + $0x20] sm:$0xff]
        %v147 = vld [vmem:[%s114 + $0x28] sm:$0xff]
        %v148 = vld [vmem:[%s114 + $0x30] sm:$0xff]
        %v149 = vld [vmem:[%s114 + $0x38] sm:$0xff]
        %v150 = vmul.f32 %v142, 0.27406862
        %v151 = vmul.f32 %v143, 0.27406862
        %v152 = vmul.f32 %v144, 0.27406862
        %v153 = vmul.f32 %v145, 0.27406862
        %v154 = vmul.f32 %v146, 0.27406862
        %v155 = vmul.f32 %v147, 0.27406862
        %v156 = vmul.f32 %v148, 0.27406862
        %v157 = vmul.f32 %v149, 0.27406862
        %v158 = vmul.f32 %v142, 0.45186275
        %v159 = vmul.f32 %v143, 0.45186275
        %v160 = vmul.f32 %v144, 0.45186275
        %v161 = vmul.f32 %v145, 0.45186275
        %v162 = vmul.f32 %v146, 0.45186275
        %v163 = vmul.f32 %v147, 0.45186275
        %v164 = vmul.f32 %v148, 0.45186275
        %v165 = vmul.f32 %v149, 0.45186275
        %vm174 = vcmask 1046528
        %v175 = vrot.slane %v158, 1
        %v176 = vrot.slane %v159, 1
        %v177 = vsel %vm174, %v175, %v176
        %v178 = vrot.slane %v160, 1
        %v179 = vrot.slane %v161, 1
        %v180 = vsel %vm174, %v178, %v179
        %v181 = vrot.slane %v162, 1
        %v182 = vrot.slane %v163, 1
        %v183 = vsel %vm174, %v181, %v182
        %v184 = vrot.slane %v164, 1
        %v185 = vrot.slane %v165, 1
        %v186 = vsel %vm174, %v184, %v185
        %v195 = vadd.f32 %v150, %v177
        %v196 = vadd.f32 %v151, %v176
        %v197 = vadd.f32 %v152, %v180
        %v198 = vadd.f32 %v153, %v179
        %v199 = vadd.f32 %v154, %v183
        %v200 = vadd.f32 %v155, %v182
        %v201 = vadd.f32 %v156, %v186
        %v202 = vadd.f32 %v157, %v185
        %vm211 = vcmask 1045504
        %v212 = vrot.slane %v150, 2
        %v213 = vrot.slane %v151, 2
        %v214 = vsel %vm211, %v212, %v213
        %v215 = vrot.slane %v152, 2
        %v216 = vrot.slane %v153, 2
        %v217 = vsel %vm211, %v215, %v216
        %v218 = vrot.slane %v154, 2
        %v219 = vrot.slane %v155, 2
        %v220 = vsel %vm211, %v218, %v219
        %v221 = vrot.slane %v156, 2
        %v222 = vrot.slane %v157, 2
        %v223 = vsel %vm211, %v221, %v222
        %v232 = vadd.f32 %v195, %v214
        %v233 = vadd.f32 %v196, %v213
        %v234 = vadd.f32 %v197, %v217
        %v235 = vadd.f32 %v198, %v216
        %v236 = vadd.f32 %v199, %v220
        %v237 = vadd.f32 %v200, %v219
        %v238 = vadd.f32 %v201, %v223
        %v239 = vadd.f32 %v202, %v222
        %v240 = vmul.f32 %v232, 0.27406862
        %v241 = vmul.f32 %v233, 0.27406862
        %v242 = vmul.f32 %v234, 0.27406862
        %v243 = vmul.f32 %v235, 0.27406862
        %v244 = vmul.f32 %v236, 0.27406862
        %v245 = vmul.f32 %v237, 0.27406862
        %v246 = vmul.f32 %v238, 0.27406862
        %v247 = vmul.f32 %v239, 0.27406862
        %v248 = vmul.f32 %v232, 0.45186275
        %v249 = vmul.f32 %v233, 0.45186275
        %v250 = vmul.f32 %v234, 0.45186275
        %v251 = vmul.f32 %v235, 0.45186275
        %v252 = vmul.f32 %v236, 0.45186275
        %v253 = vmul.f32 %v237, 0.45186275
        %v254 = vmul.f32 %v238, 0.45186275
        %v255 = vmul.f32 %v239, 0.45186275
        %264 = vrot.lane.b32.xlu0 %v248, 127
        %v265 = vpop.permute.xlu0 %264
        %266 = vrot.lane.b32.xlu0 %v249, 127
        %v267 = vpop.permute.xlu0 %266
        %268 = vrot.lane.b32.xlu0 %v250, 127
        %v269 = vpop.permute.xlu0 %268
        %270 = vrot.lane.b32.xlu0 %v251, 127
        %v271 = vpop.permute.xlu0 %270
        %272 = vrot.lane.b32.xlu0 %v252, 127
        %v273 = vpop.permute.xlu0 %272
        %274 = vrot.lane.b32.xlu0 %v253, 127
        %v275 = vpop.permute.xlu0 %274
        %276 = vrot.lane.b32.xlu0 %v254, 127
        %v277 = vpop.permute.xlu0 %276
        %278 = vrot.lane.b32.xlu0 %v255, 127
        %v279 = vpop.permute.xlu0 %278
        %v288 = vadd.f32 %v240, %v265
        %v289 = vadd.f32 %v241, %v267
        %v290 = vadd.f32 %v242, %v269
        %v291 = vadd.f32 %v243, %v271
        %v292 = vadd.f32 %v244, %v273
        %v293 = vadd.f32 %v245, %v275
        %v294 = vadd.f32 %v246, %v277
        %v295 = vadd.f32 %v247, %v279
        %304 = vrot.lane.b32.xlu0 %v240, 126
        %v305 = vpop.permute.xlu0 %304
        %306 = vrot.lane.b32.xlu0 %v241, 126
        %v307 = vpop.permute.xlu0 %306
        %308 = vrot.lane.b32.xlu0 %v242, 126
        %v309 = vpop.permute.xlu0 %308
        %310 = vrot.lane.b32.xlu0 %v243, 126
        %v311 = vpop.permute.xlu0 %310
        %312 = vrot.lane.b32.xlu0 %v244, 126
        %v313 = vpop.permute.xlu0 %312
        %314 = vrot.lane.b32.xlu0 %v245, 126
        %v315 = vpop.permute.xlu0 %314
        %316 = vrot.lane.b32.xlu0 %v246, 126
        %v317 = vpop.permute.xlu0 %316
        %318 = vrot.lane.b32.xlu0 %v247, 126
        %v319 = vpop.permute.xlu0 %318
        %v328 = vadd.f32 %v288, %v305
        %v329 = vadd.f32 %v289, %v307
        %v330 = vadd.f32 %v290, %v309
        %v331 = vadd.f32 %v291, %v311
        %v332 = vadd.f32 %v292, %v313
        %v333 = vadd.f32 %v293, %v315
        %v334 = vadd.f32 %v294, %v317
        %v335 = vadd.f32 %v295, %v319
        %vm336 = vcmask 113664
        %337 = vst.msk [vmem:[%s140] sm:$0xff] %vm336, %v328
        %vm338 = vcmask 111616
        %339 = vst.msk [vmem:[%s140 + $0x8] sm:$0x3f] %vm338, %v329
        %340 = vst.msk [vmem:[%s140 + $0x10] sm:$0xff] %vm336, %v330
        %341 = vst.msk [vmem:[%s140 + $0x18] sm:$0x3f] %vm338, %v331
        %342 = vst.msk [vmem:[%s140 + $0x20] sm:$0xff] %vm336, %v332
        %343 = vst.msk [vmem:[%s140 + $0x28] sm:$0x3f] %vm338, %v333
        %344 = vst.msk [vmem:[%s140 + $0x30] sm:$0xff] %vm336, %v334
        %345 = vst.msk [vmem:[%s140 + $0x38] sm:$0x3f] %vm338, %v335
        %s346 = smul.u32 4, %s15
        %p347 = scmp.lt.s32.totalorder %s346, 7
        %s348 = scalar_select %p347, %s346, 7
        %s349 = smul.addr %s348, 2
        %s350 = smul.addr %s349, 8
        %s351 = scalar_lea.vmem %s1, %s350
        // Predicated region
        $region29: #{tpu_custom_call.1} parent=23 // pred_check
          %p352 = pneg %p59
        $region30: #{tpu_custom_call.1} parent=23 // pred_check_branch
          %354 = sbr.rel (%p352) target = $region32
        $region31: #{tpu_custom_call.1} parent=23 // pred_region
          %s355 = smul.u32 4, %s15
        $region32: #{tpu_custom_call.1} parent=23 // pred_fallthru
          _
      $region24: #{tpu_custom_call.1} parent=5 // pred_fallthru
        _
      %p356 = scmp.le.s32.totalorder 2, %s10
      // Predicated region
      $region33: #{tpu_custom_call.1} parent=5 // pred_check
        %p357 = pneg %p356
      $region34: #{tpu_custom_call.1} parent=5 // pred_check_branch
        %359 = sbr.rel (%p357) target = $region36
      $region35: #{tpu_custom_call.1} parent=5 // pred_region
        %s360 = ssub.s32 %s10, 2
        // Predicated region
        $region37: #{tpu_custom_call.1} parent=35 // pred_check
          %p361 = pneg %p65
        $region38: #{tpu_custom_call.1} parent=35 // pred_check_branch
          %363 = sbr.rel (%p361) target = $region40
        $region39: #{tpu_custom_call.1} parent=35 // pred_region
          %s364 = smul.u32 4, %s16
          %p365 = scmp.lt.s32.totalorder %s364, 7
          %s366 = scalar_select %p365, %s364, 7
          %s367 = smul.addr %s366, 2
          %s368 = smul.addr %s367, 8
          %s369 = scalar_lea.vmem %s1, %s368
        $region40: #{tpu_custom_call.1} parent=35 // pred_fallthru
          _
      $region36: #{tpu_custom_call.1} parent=5 // pred_fallthru
        _
    $region6: #{tpu_custom_call.1} parent=1 // loop_footer
      %s14 = sadd.s32 1, %s10
    $region7: #{tpu_custom_call.1} parent=1 // loop_footer_branch
      %9 = sbr.rel target = $region3
    $region8: #{tpu_custom_call.1} parent=1 // loop_exit
      _
    %370 = vsyncpa [#allocation3], 1
    %s371 = scalar_lea.sflag [#allocation3], 1
    %372 = vsyncpa %s371, 1

</llo_original>
